<compile_context>
chip_gen: v7x
topology: tpu7x:2x2x1
jax: 0.10.0
libtpu: 0.0.40
codegen_flags: <defaults>
</compile_context>

<pallas_src>
import jax
import jax.numpy as jnp
import numpy as np
from jax.experimental import pallas as pl
from jax.experimental.pallas import tpu as pltpu


FPAD = 128            # lane-dense feature width for hidden / output features
SRC_LANE = FPAD - 2   # augmented-weight column holding W @ att_src
DST_LANE = FPAD - 1   # augmented-weight column holding W @ att_dst


def make_fused_gat_kernel(out_channels):
    """Fused 2-layer GATConv forward on a dense adjacency (one graph per grid step)."""

    def gat_layer(feat, w_aug, bias, ae, mask):
        # feat: [N, Fin]; w_aug: [Fin, FPAD] with
        #   cols [0:C)    -> W            (h = feat @ W, zero-padded to FPAD lanes)
        #   col SRC_LANE  -> W @ att_src  (that column of h is a_src)
        #   col DST_LANE  -> W @ att_dst  (that column of h is a_dst)
        # -> one MXU pass produces h, a_src and a_dst together.
        h = jnp.dot(feat, w_aug, preferred_element_type=jnp.float32)       # [N, FPAD]
        a_src = h[:, SRC_LANE:SRC_LANE + 1]                                 # [N, 1]
        a_dst = h[:, DST_LANE:DST_LANE + 1]                                 # [N, 1]
        # scores[i, j]: edge j -> i (dst i, src j)
        s = a_dst + a_src.T + ae                                            # [N, N]
        s = jnp.where(s > 0, s, 0.2 * s)                                    # LeakyReLU(0.2)
        s = jnp.where(mask, s, jnp.float32(-1e30))
        m = jnp.max(s, axis=-1, keepdims=True)
        # masked entries underflow to exactly 0 in exp -> no second mask select
        p = jnp.exp(s - m)
        # denom > 0 is guaranteed: every destination has a self-loop
        denom = jnp.sum(p, axis=-1, keepdims=True)                          # [N, 1]
        inv = pl.reciprocal(denom, approx=True)                             # EUP slot
        inv = inv * (2.0 - denom * inv)                                     # Newton step (O(N))
        attn = p * inv
        # Columns >= C of the result are either 0 (zero weight columns) or, at
        # SRC_LANE/DST_LANE, attn-weighted a_src/a_dst; they are killed by the
        # zero rows of the next layer's w_aug / the final log_softmax column mask.
        return jnp.dot(attn, h, preferred_element_type=jnp.float32) + bias

    def kernel(x_ref, mask_ref, ae1_ref, ae2_ref,
               w1_ref, b1_ref, w2_ref, b2_ref, out_ref):
        mask = mask_ref[...] > 0
        # layer 1 -> ReLU (dropout / PairNorm / DropEdge / JLC are no-ops in eval)
        h1 = gat_layer(x_ref[...], w1_ref[...], b1_ref[...], ae1_ref[...], mask)
        h1 = jnp.maximum(h1, 0.0)
        # layer 2 -> log_softmax over the real output columns only
        out = gat_layer(h1, w2_ref[...], b2_ref[...], ae2_ref[...], mask)
        col = jax.lax.broadcasted_iota(jnp.int32, out.shape, 1)
        out = jnp.where(col < out_channels, out, jnp.float32(-1e30))
        mm = jnp.max(out, axis=-1, keepdims=True)
        z = out - mm
        out = z - jnp.log(jnp.sum(jnp.exp(z), axis=-1, keepdims=True))
        out_ref[...] = out.astype(out_ref.dtype)        # lane-dense [N, FPAD] store

    return kernel


def _augment_weight(W, att_src, att_dst, rows_pad=None):
    """[f_in, C] weight -> [rows_pad, FPAD] block with a_src/a_dst projection lanes."""
    f_in, c = W.shape
    rows = f_in if rows_pad is None else rows_pad
    w_aug = jnp.zeros((rows, FPAD), jnp.float32)
    w_aug = w_aug.at[:f_in, :c].set(W)
    w_aug = w_aug.at[:f_in, SRC_LANE].set(W @ att_src)
    w_aug = w_aug.at[:f_in, DST_LANE].set(W @ att_dst)
    return w_aug


def _pad_bias(bias):
    b = jnp.zeros((1, FPAD), jnp.float32)
    return b.at[0, :bias.shape[0]].set(bias)


def gat_forward_pallas(x, mask, eattr, params1, params2):
    """x: [B,N,Fin], mask: [B,N,N], eattr: [B,2,N,N] -> [B,N,out_channels]."""
    B, N, f_in = x.shape
    c1 = params1["W"].shape[1]
    c2 = params2["W"].shape[1]
    assert c1 <= FPAD - 2 and c2 <= FPAD - 2

    w1_aug = _augment_weight(params1["W"], params1["att_src"], params1["att_dst"])
    w2_aug = _augment_weight(params2["W"], params2["att_src"], params2["att_dst"],
                             rows_pad=FPAD)   # zero rows kill layer-1 padding lanes
    b1 = _pad_bias(params1["bias"])
    b2 = _pad_bias(params2["bias"])

    # pre-combine the edge-attr channels per layer: one [B,N,N] plane per layer
    ae1 = eattr[:, 0] * params1["w_e"][0] + eattr[:, 1] * params1["w_e"][1]
    ae2 = eattr[:, 0] * params2["w_e"][0] + eattr[:, 1] * params2["w_e"][1]

    grid_spec = pltpu.PrefetchScalarGridSpec(
        num_scalar_prefetch=0,
        grid=(B,),
        in_specs=[
            pl.BlockSpec((None, N, f_in), lambda b: (b, 0, 0)),   # x
            pl.BlockSpec((None, N, N), lambda b: (b, 0, 0)),      # mask
            pl.BlockSpec((None, N, N), lambda b: (b, 0, 0)),      # ae layer 1
            pl.BlockSpec((None, N, N), lambda b: (b, 0, 0)),      # ae layer 2
            pl.BlockSpec((f_in, FPAD), lambda b: (0, 0)),         # w1_aug
            pl.BlockSpec((1, FPAD), lambda b: (0, 0)),            # bias1
            pl.BlockSpec((FPAD, FPAD), lambda b: (0, 0)),         # w2_aug
            pl.BlockSpec((1, FPAD), lambda b: (0, 0)),            # bias2
        ],
        out_specs=pl.BlockSpec((None, N, FPAD), lambda b: (b, 0, 0)),
    )
    out = pl.pallas_call(
        make_fused_gat_kernel(c2),
        out_shape=jax.ShapeDtypeStruct((B, N, FPAD), jnp.float32),
        grid_spec=grid_spec,
        compiler_params=pltpu.CompilerParams(dimension_semantics=("parallel",)),
    )(x, mask, ae1, ae2, w1_aug, b1, w2_aug, b2)
    return out[:, :, :c2]


# ----------------------------- pure-JAX reference -----------------------------

def gat_layer_ref(x, W, att_src, att_dst, w_e, bias, mask, eattr, activation):
    h = x @ W
    a_src = h @ att_src
    a_dst = h @ att_dst
    ae = eattr[0] * w_e[0] + eattr[1] * w_e[1]
    s = a_dst[:, None] + a_src[None, :] + ae
    s = jnp.where(s > 0, s, 0.2 * s)
    s = jnp.where(mask > 0, s, -1e30)
    p = jax.nn.softmax(s, axis=-1)
    p = jnp.where(mask > 0, p, 0.0)
    out = p @ h + bias[None, :]
    if activation == "relu":
        out = jax.nn.relu(out)
    elif activation == "log_softmax":
        out = jax.nn.log_softmax(out, axis=-1)
    return out


def gat_forward_ref(x, mask, eattr, params1, params2):
    h = gat_layer_ref(x, params1["W"], params1["att_src"], params1["att_dst"],
                      params1["w_e"], params1["bias"], mask, eattr, "relu")
    return gat_layer_ref(h, params2["W"], params2["att_src"], params2["att_dst"],
                         params2["w_e"], params2["bias"], mask, eattr, "log_softmax")


# ----------------------------- graph / param setup -----------------------------

def dense_graph(edge_index, edge_attr, num_nodes):
    """edge list -> dense mask [N,N] (dst, src) and dense edge attrs [2,N,N],
    with self-loops added using PyG's fill_value='mean' (per-dst mean)."""
    src = edge_index[0]
    dst = edge_index[1]
    N = num_nodes
    mask = jnp.zeros((N, N), jnp.float32).at[dst, src].set(1.0)
    e0 = jnp.zeros((N, N), jnp.float32).at[dst, src].set(edge_attr[:, 0])
    e1 = jnp.zeros((N, N), jnp.float32).at[dst, src].set(edge_attr[:, 1])
    deg = jnp.zeros((N,), jnp.float32).at[dst].add(1.0)
    s0 = jnp.zeros((N,), jnp.float32).at[dst].add(edge_attr[:, 0])
    s1 = jnp.zeros((N,), jnp.float32).at[dst].add(edge_attr[:, 1])
    loop0 = s0 / jnp.maximum(deg, 1.0)
    loop1 = s1 / jnp.maximum(deg, 1.0)
    diag = jnp.arange(N)
    mask = mask.at[diag, diag].set(1.0)
    e0 = e0.at[diag, diag].set(loop0)
    e1 = e1.at[diag, diag].set(loop1)
    eattr = jnp.stack([e0, e1], axis=0)  # [2, N, N]
    return mask, eattr


def init_gatconv_params(key, f_in, f_out):
    k = jax.random.split(key, 6)
    scale_w = 1.0 / np.sqrt(f_in)
    W = jax.random.normal(k[0], (f_in, f_out), jnp.float32) * scale_w   # lin_src.weight.T
    att_src = jax.random.normal(k[1], (f_out,), jnp.float32) * 0.1
    att_dst = jax.random.normal(k[2], (f_out,), jnp.float32) * 0.1
    att_edge = jax.random.normal(k[3], (f_out,), jnp.float32) * 0.1
    lin_edge_T = jax.random.normal(k[4], (2, f_out), jnp.float32) * 0.5  # lin_edge.weight.T
    bias = jax.random.normal(k[5], (f_out,), jnp.float32) * 0.1
    w_e = lin_edge_T @ att_edge  # [2] combined edge-attr attention vector
    return dict(W=W, att_src=att_src, att_dst=att_dst, w_e=w_e, bias=bias)


if __name__ == "__main__":
    B = 2             # graphs, mapped to a parallel grid axis
    N = 16            # nodes per graph
    IN_CH = 8         # in_channels
    HIDDEN = 32       # args.hidden_units
    OUT_CH = 4        # out_channels
    EDGE_DIM = 2

    key = jax.random.PRNGKey(0)
    kx, ke, k1, k2 = jax.random.split(key, 4)

    x = jax.random.normal(kx, (B, N, IN_CH), jnp.float32)

    # two small deterministic graphs: bidirectional ring + per-graph chords
    chords = [
        [(0, 8), (8, 0), (3, 11), (11, 3), (5, 13), (13, 5)],
        [(2, 9), (9, 2), (4, 12), (12, 4), (6, 15), (15, 6)],
    ]
    ekeys = jax.random.split(ke, B)
    masks, eattrs = [], []
    for g in range(B):
        src_list, dst_list = [], []
        for i in range(N):
            src_list += [i, (i + 1) % N]
            dst_list += [(i + 1) % N, i]
        for a, b in chords[g]:
            src_list.append(a)
            dst_list.append(b)
        edge_index = jnp.array([src_list, dst_list], dtype=jnp.int32)     # [2, E]
        E = edge_index.shape[1]
        edge_attr = jax.random.normal(ekeys[g], (E, EDGE_DIM), jnp.float32)
        m, ea = dense_graph(edge_index, edge_attr, N)
        masks.append(m)
        eattrs.append(ea)
    mask = jnp.stack(masks)      # [B, N, N]
    eattr = jnp.stack(eattrs)    # [B, 2, N, N]

    params1 = init_gatconv_params(k1, IN_CH, HIDDEN)
    params2 = init_gatconv_params(k2, HIDDEN, OUT_CH)

    out = gat_forward_pallas(x, mask, eattr, params1, params2)
    out = jax.block_until_ready(out)

    ref = jax.vmap(gat_forward_ref, in_axes=(0, 0, 0, None, None))(
        x, mask, eattr, params1, params2)
    ref = jax.block_until_ready(ref)

    assert out.shape == (B, N, OUT_CH)
    assert np.allclose(np.asarray(out), np.asarray(ref), rtol=1e-3, atol=1e-3)
    # rows of log_softmax must exp-sum to 1
    assert np.allclose(np.exp(np.asarray(out)).sum(-1), 1.0, rtol=1e-3, atol=1e-3)

    print("KERNEL_OK")
</pallas_src>

<mosaic_0001>
module attributes {stable_mosaic.version = 11 : i64} {
  func.func @kernel(%arg0: i32, %arg1: memref<1x16x8xf32, #tpu.memory_space<vmem>>, %arg2: memref<1x16x16xf32, #tpu.memory_space<vmem>>, %arg3: memref<1x16x16xf32, #tpu.memory_space<vmem>>, %arg4: memref<1x16x16xf32, #tpu.memory_space<vmem>>, %arg5: memref<8x128xf32, #tpu.memory_space<vmem>>, %arg6: memref<1x128xf32, #tpu.memory_space<vmem>>, %arg7: memref<128x128xf32, #tpu.memory_space<vmem>>, %arg8: memref<1x128xf32, #tpu.memory_space<vmem>>, %arg9: memref<1x16x128xf32, #tpu.memory_space<vmem>>) attributes {dimension_semantics = [#tpu.dimension_semantics<parallel>], iteration_bounds = array<i64: 2>, scalar_prefetch = 0 : i64, scratch_operands = 0 : i64, tpu.core_type = #tpu.core_type<tc>, window_params = [{transform_indices = @transform_0, window_bounds = array<i64: 1, 16, 8>}, {transform_indices = @transform_1, window_bounds = array<i64: 1, 16, 16>}, {transform_indices = @transform_2, window_bounds = array<i64: 1, 16, 16>}, {transform_indices = @transform_3, window_bounds = array<i64: 1, 16, 16>}, {pipeline_mode = #tpu.pipeline_mode<synchronous>, transform_indices = @transform_4, window_bounds = array<i64: 8, 128>}, {pipeline_mode = #tpu.pipeline_mode<synchronous>, transform_indices = @transform_5, window_bounds = array<i64: 1, 128>}, {pipeline_mode = #tpu.pipeline_mode<synchronous>, transform_indices = @transform_6, window_bounds = array<i64: 128, 128>}, {pipeline_mode = #tpu.pipeline_mode<synchronous>, transform_indices = @transform_7, window_bounds = array<i64: 1, 128>}, {transform_indices = @transform_8, window_bounds = array<i64: 1, 16, 128>}]} {
    %c0 = arith.constant 0 : index
    %c0_0 = arith.constant 0 : index
    %c0_1 = arith.constant 0 : index
    %0 = vector.load %arg2[%c0, %c0_0, %c0_1] : memref<1x16x16xf32, #tpu.memory_space<vmem>>, vector<1x16x16xf32>
    %1 = vector.shape_cast %0 : vector<1x16x16xf32> to vector<16x16xf32>
    %cst = arith.constant 0.000000e+00 : f32
    %2 = vector.broadcast %cst : f32 to vector<16x16xf32>
    %3 = arith.cmpf ogt, %1, %2 : vector<16x16xf32>
    %c0_2 = arith.constant 0 : index
    %c0_3 = arith.constant 0 : index
    %c0_4 = arith.constant 0 : index
    %4 = vector.load %arg1[%c0_2, %c0_3, %c0_4] : memref<1x16x8xf32, #tpu.memory_space<vmem>>, vector<1x16x8xf32>
    %5 = vector.shape_cast %4 : vector<1x16x8xf32> to vector<16x8xf32>
    %c0_5 = arith.constant 0 : index
    %c0_6 = arith.constant 0 : index
    %6 = vector.load %arg5[%c0_5, %c0_6] : memref<8x128xf32, #tpu.memory_space<vmem>>, vector<8x128xf32>
    %c0_7 = arith.constant 0 : index
    %c0_8 = arith.constant 0 : index
    %7 = vector.load %arg6[%c0_7, %c0_8] : memref<1x128xf32, #tpu.memory_space<vmem>>, vector<1x128xf32>
    %c0_9 = arith.constant 0 : index
    %c0_10 = arith.constant 0 : index
    %c0_11 = arith.constant 0 : index
    %8 = vector.load %arg3[%c0_9, %c0_10, %c0_11] : memref<1x16x16xf32, #tpu.memory_space<vmem>>, vector<1x16x16xf32>
    %9 = vector.shape_cast %8 : vector<1x16x16xf32> to vector<16x16xf32>
    %cst_12 = arith.constant dense<0.000000e+00> : vector<16x128xf32>
    %10 = tpu.matmul %5, %6, %cst_12 {dimension_numbers = #tpu.dot_dimension_numbers<[1], [0], [0], [1], [0, 0, 1, 1], [], []>} : vector<16x8xf32>, vector<8x128xf32>, vector<16x128xf32> -> vector<16x128xf32>
    %11 = vector.extract_strided_slice %10 {offsets = [0, 126], sizes = [16, 1], strides = [1, 1]} : vector<16x128xf32> to vector<16x1xf32>
    %12 = vector.extract_strided_slice %10 {offsets = [0, 127], sizes = [16, 1], strides = [1, 1]} : vector<16x128xf32> to vector<16x1xf32>
    %13 = tpu.transpose %11, [1, 0] : vector<16x1xf32> -> vector<1x16xf32>
    %14 = vector.broadcast %12 : vector<16x1xf32> to vector<16x16xf32>
    %15 = vector.broadcast %13 : vector<1x16xf32> to vector<16x16xf32>
    %16 = arith.addf %14, %15 : vector<16x16xf32>
    %17 = arith.addf %16, %9 : vector<16x16xf32>
    %cst_13 = arith.constant 0.000000e+00 : f32
    %18 = vector.broadcast %cst_13 : f32 to vector<16x16xf32>
    %19 = arith.cmpf ogt, %17, %18 : vector<16x16xf32>
    %cst_14 = arith.constant 2.000000e-01 : f32
    %20 = vector.broadcast %cst_14 : f32 to vector<16x16xf32>
    %21 = arith.mulf %20, %17 : vector<16x16xf32>
    %22 = arith.select %19, %17, %21 : vector<16x16xi1>, vector<16x16xf32>
    %cst_15 = arith.constant -1.000000e+30 : f32
    %23 = vector.broadcast %cst_15 : f32 to vector<16x16xf32>
    %24 = arith.select %3, %22, %23 : vector<16x16xi1>, vector<16x16xf32>
    %cst_16 = arith.constant dense<0xFF800000> : vector<16xf32>
    %25 = vector.multi_reduction <maximumf>, %24, %cst_16 [1] : vector<16x16xf32> to vector<16xf32>
    %26 = vector.shape_cast %25 : vector<16xf32> to vector<16x1xf32>
    %27 = vector.broadcast %26 : vector<16x1xf32> to vector<16x16xf32>
    %28 = arith.subf %24, %27 : vector<16x16xf32>
    %29 = math.exp %28 : vector<16x16xf32>
    %cst_17 = arith.constant dense<0.000000e+00> : vector<16xf32>
    %30 = vector.multi_reduction <add>, %29, %cst_17 [1] : vector<16x16xf32> to vector<16xf32>
    %31 = vector.shape_cast %30 : vector<16xf32> to vector<16x1xf32>
    %32 = tpu.reciprocal %31 {approx = true} : vector<16x1xf32> -> vector<16x1xf32>
    %33 = arith.mulf %31, %32 : vector<16x1xf32>
    %cst_18 = arith.constant 2.000000e+00 : f32
    %34 = vector.broadcast %cst_18 : f32 to vector<16x1xf32>
    %35 = arith.subf %34, %33 : vector<16x1xf32>
    %36 = arith.mulf %32, %35 : vector<16x1xf32>
    %37 = vector.broadcast %36 : vector<16x1xf32> to vector<16x16xf32>
    %38 = arith.mulf %29, %37 : vector<16x16xf32>
    %cst_19 = arith.constant dense<0.000000e+00> : vector<16x128xf32>
    %39 = tpu.matmul %38, %10, %cst_19 {dimension_numbers = #tpu.dot_dimension_numbers<[1], [0], [0], [1], [0, 0, 1, 1], [], []>} : vector<16x16xf32>, vector<16x128xf32>, vector<16x128xf32> -> vector<16x128xf32>
    %40 = vector.broadcast %7 : vector<1x128xf32> to vector<16x128xf32>
    %41 = arith.addf %39, %40 : vector<16x128xf32>
    %cst_20 = arith.constant 0.000000e+00 : f32
    %42 = vector.broadcast %cst_20 : f32 to vector<16x128xf32>
    %43 = arith.maximumf %41, %42 : vector<16x128xf32>
    %c0_21 = arith.constant 0 : index
    %c0_22 = arith.constant 0 : index
    %44 = vector.load %arg7[%c0_21, %c0_22] : memref<128x128xf32, #tpu.memory_space<vmem>>, vector<128x128xf32>
    %c0_23 = arith.constant 0 : index
    %c0_24 = arith.constant 0 : index
    %45 = vector.load %arg8[%c0_23, %c0_24] : memref<1x128xf32, #tpu.memory_space<vmem>>, vector<1x128xf32>
    %c0_25 = arith.constant 0 : index
    %c0_26 = arith.constant 0 : index
    %c0_27 = arith.constant 0 : index
    %46 = vector.load %arg4[%c0_25, %c0_26, %c0_27] : memref<1x16x16xf32, #tpu.memory_space<vmem>>, vector<1x16x16xf32>
    %47 = vector.shape_cast %46 : vector<1x16x16xf32> to vector<16x16xf32>
    %cst_28 = arith.constant dense<0.000000e+00> : vector<16x128xf32>
    %48 = tpu.matmul %43, %44, %cst_28 {dimension_numbers = #tpu.dot_dimension_numbers<[1], [0], [0], [1], [0, 0, 1, 1], [], []>} : vector<16x128xf32>, vector<128x128xf32>, vector<16x128xf32> -> vector<16x128xf32>
    %49 = vector.extract_strided_slice %48 {offsets = [0, 126], sizes = [16, 1], strides = [1, 1]} : vector<16x128xf32> to vector<16x1xf32>
    %50 = vector.extract_strided_slice %48 {offsets = [0, 127], sizes = [16, 1], strides = [1, 1]} : vector<16x128xf32> to vector<16x1xf32>
    %51 = tpu.transpose %49, [1, 0] : vector<16x1xf32> -> vector<1x16xf32>
    %52 = vector.broadcast %50 : vector<16x1xf32> to vector<16x16xf32>
    %53 = vector.broadcast %51 : vector<1x16xf32> to vector<16x16xf32>
    %54 = arith.addf %52, %53 : vector<16x16xf32>
    %55 = arith.addf %54, %47 : vector<16x16xf32>
    %cst_29 = arith.constant 0.000000e+00 : f32
    %56 = vector.broadcast %cst_29 : f32 to vector<16x16xf32>
    %57 = arith.cmpf ogt, %55, %56 : vector<16x16xf32>
    %cst_30 = arith.constant 2.000000e-01 : f32
    %58 = vector.broadcast %cst_30 : f32 to vector<16x16xf32>
    %59 = arith.mulf %58, %55 : vector<16x16xf32>
    %60 = arith.select %57, %55, %59 : vector<16x16xi1>, vector<16x16xf32>
    %cst_31 = arith.constant -1.000000e+30 : f32
    %61 = vector.broadcast %cst_31 : f32 to vector<16x16xf32>
    %62 = arith.select %3, %60, %61 : vector<16x16xi1>, vector<16x16xf32>
    %cst_32 = arith.constant dense<0xFF800000> : vector<16xf32>
    %63 = vector.multi_reduction <maximumf>, %62, %cst_32 [1] : vector<16x16xf32> to vector<16xf32>
    %64 = vector.shape_cast %63 : vector<16xf32> to vector<16x1xf32>
    %65 = vector.broadcast %64 : vector<16x1xf32> to vector<16x16xf32>
    %66 = arith.subf %62, %65 : vector<16x16xf32>
    %67 = math.exp %66 : vector<16x16xf32>
    %cst_33 = arith.constant dense<0.000000e+00> : vector<16xf32>
    %68 = vector.multi_reduction <add>, %67, %cst_33 [1] : vector<16x16xf32> to vector<16xf32>
    %69 = vector.shape_cast %68 : vector<16xf32> to vector<16x1xf32>
    %70 = tpu.reciprocal %69 {approx = true} : vector<16x1xf32> -> vector<16x1xf32>
    %71 = arith.mulf %69, %70 : vector<16x1xf32>
    %cst_34 = arith.constant 2.000000e+00 : f32
    %72 = vector.broadcast %cst_34 : f32 to vector<16x1xf32>
    %73 = arith.subf %72, %71 : vector<16x1xf32>
    %74 = arith.mulf %70, %73 : vector<16x1xf32>
    %75 = vector.broadcast %74 : vector<16x1xf32> to vector<16x16xf32>
    %76 = arith.mulf %67, %75 : vector<16x16xf32>
    %cst_35 = arith.constant dense<0.000000e+00> : vector<16x128xf32>
    %77 = tpu.matmul %76, %48, %cst_35 {dimension_numbers = #tpu.dot_dimension_numbers<[1], [0], [0], [1], [0, 0, 1, 1], [], []>} : vector<16x16xf32>, vector<16x128xf32>, vector<16x128xf32> -> vector<16x128xf32>
    %78 = vector.broadcast %45 : vector<1x128xf32> to vector<16x128xf32>
    %79 = arith.addf %77, %78 : vector<16x128xf32>
    %80 = tpu.iota {dimensions = array<i32: 1>} : vector<16x128xi32>
    %c4_i32 = arith.constant 4 : i32
    %81 = vector.broadcast %c4_i32 : i32 to vector<16x128xi32>
    %82 = arith.cmpi slt, %80, %81 : vector<16x128xi32>
    %cst_36 = arith.constant -1.000000e+30 : f32
    %83 = vector.broadcast %cst_36 : f32 to vector<16x128xf32>
    %84 = arith.select %82, %79, %83 : vector<16x128xi1>, vector<16x128xf32>
    %cst_37 = arith.constant dense<0xFF800000> : vector<16xf32>
    %85 = vector.multi_reduction <maximumf>, %84, %cst_37 [1] : vector<16x128xf32> to vector<16xf32>
    %86 = vector.shape_cast %85 : vector<16xf32> to vector<16x1xf32>
    %87 = vector.broadcast %86 : vector<16x1xf32> to vector<16x128xf32>
    %88 = arith.subf %84, %87 : vector<16x128xf32>
    %89 = math.exp %88 : vector<16x128xf32>
    %cst_38 = arith.constant dense<0.000000e+00> : vector<16xf32>
    %90 = vector.multi_reduction <add>, %89, %cst_38 [1] : vector<16x128xf32> to vector<16xf32>
    %91 = vector.shape_cast %90 : vector<16xf32> to vector<16x1xf32>
    %92 = math.log %91 : vector<16x1xf32>
    %93 = vector.broadcast %92 : vector<16x1xf32> to vector<16x128xf32>
    %94 = arith.subf %88, %93 : vector<16x128xf32>
    %c0_39 = arith.constant 0 : index
    %c0_40 = arith.constant 0 : index
    %c0_41 = arith.constant 0 : index
    %95 = vector.load %arg9[%c0_39, %c0_40, %c0_41] : memref<1x16x128xf32, #tpu.memory_space<vmem>>, vector<1x16x128xf32>
    %96 = vector.shape_cast %95 : vector<1x16x128xf32> to vector<16x128xf32>
    %97 = vector.shape_cast %94 : vector<16x128xf32> to vector<1x16x128xf32>
    tpu.vector_store %arg9[%c0_39, %c0_40, %c0_41], %97 {strides = array<i32>} : memref<1x16x128xf32, #tpu.memory_space<vmem>>, vector<1x16x128xf32>,
    return
  }
  func.func @transform_0(%arg0: i32) -> (i32, i32, i32) {
    %c0_i32 = arith.constant 0 : i32
    %c0_i32_0 = arith.constant 0 : i32
    %c0_i32_1 = arith.constant 0 : i32
    return %arg0, %c0_i32, %c0_i32_0 : i32, i32, i32
  }
  func.func @transform_1(%arg0: i32) -> (i32, i32, i32) {
    %c0_i32 = arith.constant 0 : i32
    %c0_i32_0 = arith.constant 0 : i32
    %c0_i32_1 = arith.constant 0 : i32
    return %arg0, %c0_i32, %c0_i32_0 : i32, i32, i32
  }
  func.func @transform_2(%arg0: i32) -> (i32, i32, i32) {
    %c0_i32 = arith.constant 0 : i32
    %c0_i32_0 = arith.constant 0 : i32
    %c0_i32_1 = arith.constant 0 : i32
    return %arg0, %c0_i32, %c0_i32_0 : i32, i32, i32
  }
  func.func @transform_3(%arg0: i32) -> (i32, i32, i32) {
    %c0_i32 = arith.constant 0 : i32
    %c0_i32_0 = arith.constant 0 : i32
    %c0_i32_1 = arith.constant 0 : i32
    return %arg0, %c0_i32, %c0_i32_0 : i32, i32, i32
  }
  func.func @transform_4(%arg0: i32) -> (i32, i32) {
    %c0_i32 = arith.constant 0 : i32
    %c0_i32_0 = arith.constant 0 : i32
    %c0_i32_1 = arith.constant 0 : i32
    return %c0_i32, %c0_i32_0 : i32, i32
  }
  func.func @transform_5(%arg0: i32) -> (i32, i32) {
    %c0_i32 = arith.constant 0 : i32
    %c0_i32_0 = arith.constant 0 : i32
    %c0_i32_1 = arith.constant 0 : i32
    return %c0_i32, %c0_i32_0 : i32, i32
  }
  func.func @transform_6(%arg0: i32) -> (i32, i32) {
    %c0_i32 = arith.constant 0 : i32
    %c0_i32_0 = arith.constant 0 : i32
    %c0_i32_1 = arith.constant 0 : i32
    return %c0_i32, %c0_i32_0 : i32, i32
  }
  func.func @transform_7(%arg0: i32) -> (i32, i32) {
    %c0_i32 = arith.constant 0 : i32
    %c0_i32_0 = arith.constant 0 : i32
    %c0_i32_1 = arith.constant 0 : i32
    return %c0_i32, %c0_i32_0 : i32, i32
  }
  func.func @transform_8(%arg0: i32) -> (i32, i32, i32) {
    %c0_i32 = arith.constant 0 : i32
    %c0_i32_0 = arith.constant 0 : i32
    %c0_i32_1 = arith.constant 0 : i32
    return %arg0, %c0_i32, %c0_i32_0 : i32, i32, i32
  }
}

</mosaic_0001>

<llo_original>
// kernel: tpu_custom_call.1
$region0: #{tpu_custom_call.1}
  #allocation0 [shape = 'u32[]', space=smem, size = 0x4, offset = 0x4, fixed_abs, tag = 'smem constant byte address 0x4 - core index']
  #allocation1 [shape = 'u32[144,128]{1,0:T(1,128)}', space=vmem, size = 0x12000, scoped, tag = 'internal scratch']
  %s0 = inlined_call_operand.vmem [shape: f32[2,16,8], index: 0, kind: input, shape index: {}]
  %s1 = inlined_call_operand.vmem [shape: f32[2,16,16], index: 1, kind: input, shape index: {}]
  %s2 = inlined_call_operand.hbm [shape: f32[2,16,16], index: 2, kind: input, shape index: {}]
  %s3 = inlined_call_operand.hbm [shape: f32[2,16,16], index: 3, kind: input, shape index: {}]
  %s4 = inlined_call_operand.vmem [shape: f32[8,128], index: 4, kind: input, shape index: {}]
  %s5 = inlined_call_operand.vmem [shape: f32[1,128], index: 5, kind: input, shape index: {}]
  %s6 = inlined_call_operand.hbm [shape: f32[128,128], index: 6, kind: input, shape index: {}]
  %s7 = inlined_call_operand.vmem [shape: f32[1,128], index: 7, kind: input, shape index: {}]
  %s8 = inlined_call_operand.hbm [shape: f32[2,16,128], index: 8, kind: output, shape index: {}]
  %s9 = sld [smem:[#allocation0]]
  $region77: #{tpu_custom_call.1} parent=0
    _
  %s11 = ssub.s32 1, %s9
  %s12 = scalar_select 0, %s11, %s9
  $region1: #{tpu_custom_call.1} parent=0
    #allocation2 [shape = 'u8[16384]{0}', space=vmem, size = 0x4000, scoped, tag = 'input window, operand 2']
    #allocation3 [shape = 's32[2]{0}', space=sflag, size = 0x8, scoped, tag = 'scoped memory for tpu_custom_call.1']
    #allocation4 [shape = 's32[2]{0}', space=sflag, size = 0x8, scoped, tag = 'scoped memory for tpu_custom_call.1']
    #allocation5 [shape = 'u8[16384]{0}', space=vmem, size = 0x4000, scoped, tag = 'input window, operand 3']
    #allocation6 [shape = 's32[2]{0}', space=sflag, size = 0x8, scoped, tag = 'scoped memory for tpu_custom_call.1']
    #allocation7 [shape = 'u8[65536]{0}', space=vmem, size = 0x10000, scoped, tag = 'input window, operand 6, single buffered']
    #allocation8 [shape = 'u8[16384]{0}', space=vmem, size = 0x4000, scoped, tag = 'output window, operand 0']
    %13 = vsyncpa [#allocation3], 0
    %s14 = scalar_lea.sflag [#allocation3], 1
    %15 = vsyncpa %s14, 0
    %16 = vsyncpa [#allocation6], 0
    %s17 = scalar_lea.sflag [#allocation6], 1
    %18 = vsyncpa %s17, 0
    %19 = vsyncpa [#allocation4], 0
    %s20 = scalar_lea.sflag [#allocation4], 1
    %21 = vsyncpa %s20, 0
    loop: start=0, step=1, limit=4
    $region2: #{tpu_custom_call.1} parent=1 // loop_pre_header
      _
    $region3: #{tpu_custom_call.1} parent=1 // loop_header
      %s23 = sphi 0, %s27
      %p24 = scmp.ge.s32.totalorder %s23, 4
      %s33 = sphi 0, %s35
      %s36 = sphi 0, %s33
      %s37 = sphi 0, %s36
      %s53 = sphi 0, %s37
      %s59 = sphi 0, %s61
      %s62 = sphi 0, %s59
      %s63 = sphi 0, %s62
      %s79 = sphi 0, %s63
      %s85 = sphi 0, %s87
      %s88 = sphi 0, %s85
      %s89 = sphi 0, %s88
      %s105 = sphi 0, %s89
      %s111 = sphi 0, %s113
      %s114 = sphi 0, %s111
      %s115 = sphi 0, %s114
      %s131 = sphi 0, %s115
      %s135 = sphi 0, %s135
      %s137 = sphi 0, %s135
      %s138 = sphi 0, %s137
      %s152 = sphi 0, %s138
      %s156 = sphi 0, %s156
      %s158 = sphi 0, %s156
      %s159 = sphi 0, %s158
      %s173 = sphi 0, %s159
      %s177 = sphi 0, %s177
      %s179 = sphi 0, %s177
      %s180 = sphi 0, %s179
      %s194 = sphi 0, %s180
      %s198 = sphi 0, %s198
      %s200 = sphi 0, %s198
      %s201 = sphi 0, %s200
      %s215 = sphi 0, %s201
      %s221 = sphi 0, %s223
      %s224 = sphi 0, %s221
      %s225 = sphi 0, %s224
      %s241 = sphi 0, %s225
    $region4: #{tpu_custom_call.1} parent=1 // loop_header_branch
      %26 = sbr.rel (%p24) target = $region8
    $region5: #{tpu_custom_call.1} parent=1 // loop_body
      %s28 = ssub.s32 %s23, 1
      %s29 = ssub.s32 %s23, 2
      %s30 = sadd.s32 %s23, 1
      %s31 = ssub.s32 %s23, %s30
      %p32 = scmp.eq.s32.totalorder %s31, 0
      %s34 = sadd.s32 %s33, 1
      %s35 = scalar_select %p32, %s33, %s34
      %p38 = pneg %p32
      %p39 = scmp.eq.s32.totalorder %s23, 1
      %p40 = por %p38, %p39
      %p41 = scmp.ne.s32.totalorder %s33, %s36
      %p42 = scmp.eq.s32.totalorder %s23, 0
      %p43 = por %p41, %p42
      %p44 = scmp.ne.s32.totalorder %s33, %s36
      %p45 = scmp.eq.s32.totalorder %s28, 1
      %p46 = por %p44, %p45
      %p47 = scmp.ne.s32.totalorder %s36, %s37
      %p48 = scmp.eq.s32.totalorder %s28, 0
      %p49 = por %p47, %p48
      %p50 = scmp.ne.s32.totalorder %s36, %s37
      %p51 = scmp.eq.s32.totalorder %s29, 1
      %p52 = por %p50, %p51
      %p54 = scmp.ne.s32.totalorder %s37, %s53
      %p55 = scmp.eq.s32.totalorder %s29, 0
      %p56 = por %p54, %p55
      %s57 = ssub.s32 %s23, %s30
      %p58 = scmp.eq.s32.totalorder %s57, 0
      %s60 = sadd.s32 %s59, 1
      %s61 = scalar_select %p58, %s59, %s60
      %p64 = pneg %p58
      %p65 = scmp.eq.s32.totalorder %s23, 1
      %p66 = por %p64, %p65
      %p67 = scmp.ne.s32.totalorder %s59, %s62
      %p68 = scmp.eq.s32.totalorder %s23, 0
      %p69 = por %p67, %p68
      %p70 = scmp.ne.s32.totalorder %s59, %s62
      %p71 = scmp.eq.s32.totalorder %s28, 1
      %p72 = por %p70, %p71
      %p73 = scmp.ne.s32.totalorder %s62, %s63
      %p74 = scmp.eq.s32.totalorder %s28, 0
      %p75 = por %p73, %p74
      %p76 = scmp.ne.s32.totalorder %s62, %s63
      %p77 = scmp.eq.s32.totalorder %s29, 1
      %p78 = por %p76, %p77
      %p80 = scmp.ne.s32.totalorder %s63, %s79
      %p81 = scmp.eq.s32.totalorder %s29, 0
      %p82 = por %p80, %p81
      %s83 = ssub.s32 %s23, %s30
      %p84 = scmp.eq.s32.totalorder %s83, 0
      %s86 = sadd.s32 %s85, 1
      %s87 = scalar_select %p84, %s85, %s86
      %p90 = pneg %p84
      %p91 = scmp.eq.s32.totalorder %s23, 1
      %p92 = por %p90, %p91
      %p93 = scmp.ne.s32.totalorder %s85, %s88
      %p94 = scmp.eq.s32.totalorder %s23, 0
      %p95 = por %p93, %p94
      %p96 = scmp.ne.s32.totalorder %s85, %s88
      %p97 = scmp.eq.s32.totalorder %s28, 1
      %p98 = por %p96, %p97
      %p99 = scmp.ne.s32.totalorder %s88, %s89
      %p100 = scmp.eq.s32.totalorder %s28, 0
      %p101 = por %p99, %p100
      %p102 = scmp.ne.s32.totalorder %s88, %s89
      %p103 = scmp.eq.s32.totalorder %s29, 1
      %p104 = por %p102, %p103
      %p106 = scmp.ne.s32.totalorder %s89, %s105
      %p107 = scmp.eq.s32.totalorder %s29, 0
      %p108 = por %p106, %p107
      %s109 = ssub.s32 %s23, %s30
      %p110 = scmp.eq.s32.totalorder %s109, 0
      %s112 = sadd.s32 %s111, 1
      %s113 = scalar_select %p110, %s111, %s112
      %p116 = pneg %p110
      %p117 = scmp.eq.s32.totalorder %s23, 1
      %p118 = por %p116, %p117
      %p119 = scmp.ne.s32.totalorder %s111, %s114
      %p120 = scmp.eq.s32.totalorder %s23, 0
      %p121 = por %p119, %p120
      %p122 = scmp.ne.s32.totalorder %s111, %s114
      %p123 = scmp.eq.s32.totalorder %s28, 1
      %p124 = por %p122, %p123
      %p125 = scmp.ne.s32.totalorder %s114, %s115
      %p126 = scmp.eq.s32.totalorder %s28, 0
      %p127 = por %p125, %p126
      %p128 = scmp.ne.s32.totalorder %s114, %s115
      %p129 = scmp.eq.s32.totalorder %s29, 1
      %p130 = por %p128, %p129
      %p132 = scmp.ne.s32.totalorder %s115, %s131
      %p133 = scmp.eq.s32.totalorder %s29, 0
      %p134 = por %p132, %p133
      %s136 = sadd.s32 %s135, 1
      %p139 = scmp.eq.s32.totalorder %s23, 1
      %p140 = scmp.ne.s32.totalorder %s135, %s137
      %p141 = scmp.eq.s32.totalorder %s23, 0
      %p142 = por %p140, %p141
      %p143 = scmp.ne.s32.totalorder %s135, %s137
      %p144 = scmp.eq.s32.totalorder %s28, 1
      %p145 = por %p143, %p144
      %p146 = scmp.ne.s32.totalorder %s137, %s138
      %p147 = scmp.eq.s32.totalorder %s28, 0
      %p148 = por %p146, %p147
      %p149 = scmp.ne.s32.totalorder %s137, %s138
      %p150 = scmp.eq.s32.totalorder %s29, 1
      %p151 = por %p149, %p150
      %p153 = scmp.ne.s32.totalorder %s138, %s152
      %p154 = scmp.eq.s32.totalorder %s29, 0
      %p155 = por %p153, %p154
      %s157 = sadd.s32 %s156, 1
      %p160 = scmp.eq.s32.totalorder %s23, 1
      %p161 = scmp.ne.s32.totalorder %s156, %s158
      %p162 = scmp.eq.s32.totalorder %s23, 0
      %p163 = por %p161, %p162
      %p164 = scmp.ne.s32.totalorder %s156, %s158
      %p165 = scmp.eq.s32.totalorder %s28, 1
      %p166 = por %p164, %p165
      %p167 = scmp.ne.s32.totalorder %s158, %s159
      %p168 = scmp.eq.s32.totalorder %s28, 0
      %p169 = por %p167, %p168
      %p170 = scmp.ne.s32.totalorder %s158, %s159
      %p171 = scmp.eq.s32.totalorder %s29, 1
      %p172 = por %p170, %p171
      %p174 = scmp.ne.s32.totalorder %s159, %s173
      %p175 = scmp.eq.s32.totalorder %s29, 0
      %p176 = por %p174, %p175
      %s178 = sadd.s32 %s177, 1
      %p181 = scmp.eq.s32.totalorder %s23, 1
      %p182 = scmp.ne.s32.totalorder %s177, %s179
      %p183 = scmp.eq.s32.totalorder %s23, 0
      %p184 = por %p182, %p183
      %p185 = scmp.ne.s32.totalorder %s177, %s179
      %p186 = scmp.eq.s32.totalorder %s28, 1
      %p187 = por %p185, %p186
      %p188 = scmp.ne.s32.totalorder %s179, %s180
      %p189 = scmp.eq.s32.totalorder %s28, 0
      %p190 = por %p188, %p189
      %p191 = scmp.ne.s32.totalorder %s179, %s180
      %p192 = scmp.eq.s32.totalorder %s29, 1
      %p193 = por %p191, %p192
      %p195 = scmp.ne.s32.totalorder %s180, %s194
      %p196 = scmp.eq.s32.totalorder %s29, 0
      %p197 = por %p195, %p196
      %s199 = sadd.s32 %s198, 1
      %p202 = scmp.eq.s32.totalorder %s23, 1
      %p203 = scmp.ne.s32.totalorder %s198, %s200
      %p204 = scmp.eq.s32.totalorder %s23, 0
      %p205 = por %p203, %p204
      %p206 = scmp.ne.s32.totalorder %s198, %s200
      %p207 = scmp.eq.s32.totalorder %s28, 1
      %p208 = por %p206, %p207
      %p209 = scmp.ne.s32.totalorder %s200, %s201
      %p210 = scmp.eq.s32.totalorder %s28, 0
      %p211 = por %p209, %p210
      %p212 = scmp.ne.s32.totalorder %s200, %s201
      %p213 = scmp.eq.s32.totalorder %s29, 1
      %p214 = por %p212, %p213
      %p216 = scmp.ne.s32.totalorder %s201, %s215
      %p217 = scmp.eq.s32.totalorder %s29, 0
      %p218 = por %p216, %p217
      %s219 = ssub.s32 %s23, %s30
      %p220 = scmp.eq.s32.totalorder %s219, 0
      %s222 = sadd.s32 %s221, 1
      %s223 = scalar_select %p220, %s221, %s222
      %p226 = pneg %p220
      %p227 = scmp.eq.s32.totalorder %s23, 1
      %p228 = por %p226, %p227
      %p229 = scmp.ne.s32.totalorder %s221, %s224
      %p230 = scmp.eq.s32.totalorder %s23, 0
      %p231 = por %p229, %p230
      %p232 = scmp.ne.s32.totalorder %s221, %s224
      %p233 = scmp.eq.s32.totalorder %s28, 1
      %p234 = por %p232, %p233
      %p235 = scmp.ne.s32.totalorder %s224, %s225
      %p236 = scmp.eq.s32.totalorder %s28, 0
      %p237 = por %p235, %p236
      %p238 = scmp.ne.s32.totalorder %s224, %s225
      %p239 = scmp.eq.s32.totalorder %s29, 1
      %p240 = por %p238, %p239
      %p242 = scmp.ne.s32.totalorder %s225, %s241
      %p243 = scmp.eq.s32.totalorder %s29, 0
      %p244 = por %p242, %p243
      %p245 = scmp.le.s32.totalorder 1, %s23
      %p246 = scmp.lt.s32.totalorder %s23, 3
      %p247 = pnand %p245, %p246
      %p248 = pneg %p247
      // Predicated region
      $region9: #{tpu_custom_call.1} parent=5 // pred_check
        _
      $region10: #{tpu_custom_call.1} parent=5 // pred_check_branch
        %250 = sbr.rel (%p247) target = $region12
      $region11: #{tpu_custom_call.1} parent=5 // pred_region
        %s251 = ssub.s32 %s23, 1
        // Predicated region
        $region13: #{tpu_custom_call.1} parent=11 // pred_check
          %p252 = pneg %p148
        $region14: #{tpu_custom_call.1} parent=11 // pred_check_branch
          %254 = sbr.rel (%p252) target = $region16
        $region15: #{tpu_custom_call.1} parent=11 // pred_region
          _
        $region16: #{tpu_custom_call.1} parent=11 // pred_fallthru
          _
        // Predicated region
        $region17: #{tpu_custom_call.1} parent=11 // pred_check
          %p255 = pneg %p169
        $region18: #{tpu_custom_call.1} parent=11 // pred_check_branch
          %257 = sbr.rel (%p255) target = $region20
        $region19: #{tpu_custom_call.1} parent=11 // pred_region
          _
        $region20: #{tpu_custom_call.1} parent=11 // pred_fallthru
          _
        // Predicated region
        $region21: #{tpu_custom_call.1} parent=11 // pred_check
          %p258 = pneg %p190
        $region22: #{tpu_custom_call.1} parent=11 // pred_check_branch
          %260 = sbr.rel (%p258) target = $region24
        $region23: #{tpu_custom_call.1} parent=11 // pred_region
          %s262 = ssub.s32 2048, 2048
          %263 = vsyncadd [#allocation6], %s262
          %s264 = sshll.u32 [#allocation7], 4
          %s265 = int_to_ptr.vmem [resolvable:$true] %s264
          %270 = dma.hbm_to_vmem [thread:$0]  %s6, 2048, %s265, [#allocation6], 128, 128, 8
        $region24: #{tpu_custom_call.1} parent=11 // pred_fallthru
          _
        // Predicated region
        $region25: #{tpu_custom_call.1} parent=11 // pred_check
          %p271 = pneg %p211
        $region26: #{tpu_custom_call.1} parent=11 // pred_check_branch
          %273 = sbr.rel (%p271) target = $region28
        $region27: #{tpu_custom_call.1} parent=11 // pred_region
          _
        $region28: #{tpu_custom_call.1} parent=11 // pred_fallthru
          _
      $region12: #{tpu_custom_call.1} parent=5 // pred_fallthru
        _
      %p274 = scmp.lt.s32.totalorder %s23, 2
      // Predicated region
      $region29: #{tpu_custom_call.1} parent=5 // pred_check
        %p275 = pneg %p274
      $region30: #{tpu_custom_call.1} parent=5 // pred_check_branch
        %277 = sbr.rel (%p275) target = $region32
      $region31: #{tpu_custom_call.1} parent=5 // pred_region
        // Predicated region
        $region33: #{tpu_custom_call.1} parent=31 // pred_check
          %p278 = pneg %p43
        $region34: #{tpu_custom_call.1} parent=31 // pred_check_branch
          %280 = sbr.rel (%p278) target = $region36
        $region35: #{tpu_custom_call.1} parent=31 // pred_region
          %p281 = scmp.lt.s32.totalorder %s23, 1
          %s282 = scalar_select %p281, %s23, 1
          %s283 = smul.addr %s282, 2
          %s284 = smul.addr %s283, 8
          %s285 = scalar_lea.vmem %s0, %s284
        $region36: #{tpu_custom_call.1} parent=31 // pred_fallthru
          _
        // Predicated region
        $region37: #{tpu_custom_call.1} parent=31 // pred_check
          %p286 = pneg %p69
        $region38: #{tpu_custom_call.1} parent=31 // pred_check_branch
          %288 = sbr.rel (%p286) target = $region40
        $region39: #{tpu_custom_call.1} parent=31 // pred_region
          %p289 = scmp.lt.s32.totalorder %s23, 1
          %s290 = scalar_select %p289, %s23, 1
          %s291 = smul.addr %s290, 2
          %s292 = smul.addr %s291, 8
          %s293 = scalar_lea.vmem %s1, %s292
        $region40: #{tpu_custom_call.1} parent=31 // pred_fallthru
          _
        // Predicated region
        $region41: #{tpu_custom_call.1} parent=31 // pred_check
          %p294 = pneg %p95
        $region42: #{tpu_custom_call.1} parent=31 // pred_check_branch
          %296 = sbr.rel (%p294) target = $region44
        $region43: #{tpu_custom_call.1} parent=31 // pred_region
          %s297 = sand.u32 %s85, 1
          %s298 = scalar_lea.sflag [#allocation3], %s297
          %s299 = sand.u32 %s85, 1
          %s300 = smul.addr %s299, 16
          %s301 = scalar_lea.vmem [#allocation2], %s300
          %s303 = ssub.s32 256, 256
          %304 = vsyncadd %s298, %s303
          %s305 = smul.addr %s23, 2
          %s306 = smul.addr %s305, 128
          %s307 = scalar_lea.hbm %s2, %s306
          %s308 = sshll.u32 %s301, 4
          %s309 = int_to_ptr.vmem [resolvable:$true] %s308
          %314 = dma.hbm_to_vmem [thread:$0]  %s307, 256, %s309, %s298, 128, 128, 8
        $region44: #{tpu_custom_call.1} parent=31 // pred_fallthru
          _
        // Predicated region
        $region45: #{tpu_custom_call.1} parent=31 // pred_check
          %p315 = pneg %p121
        $region46: #{tpu_custom_call.1} parent=31 // pred_check_branch
          %317 = sbr.rel (%p315) target = $region48
        $region47: #{tpu_custom_call.1} parent=31 // pred_region
          %s318 = sand.u32 %s23, 1
          %s319 = scalar_lea.sflag [#allocation6], %s318
          %s320 = sand.u32 %s111, 1
          %s321 = smul.addr %s320, 16
          %s322 = scalar_lea.vmem [#allocation5], %s321
          %s324 = ssub.s32 256, 256
          %325 = vsyncadd %s319, %s324
          %s326 = smul.addr %s23, 2
          %s327 = smul.addr %s326, 128
          %s328 = scalar_lea.hbm %s3, %s327
          %s329 = sshll.u32 %s322, 4
          %s330 = int_to_ptr.vmem [resolvable:$true] %s329
          %335 = dma.hbm_to_vmem [thread:$0]  %s328, 256, %s330, %s319, 128, 128, 8
        $region48: #{tpu_custom_call.1} parent=31 // pred_fallthru
          _
      $region32: #{tpu_custom_call.1} parent=5 // pred_fallthru
        _
      %p336 = scmp.le.s32.totalorder 1, %s23
      %p337 = scmp.lt.s32.totalorder %s23, 3
      %p338 = pnand %p336, %p337
      %p339 = pneg %p338
      // Predicated region
      $region49: #{tpu_custom_call.1} parent=5 // pred_check
        _
      $region50: #{tpu_custom_call.1} parent=5 // pred_check_branch
        %341 = sbr.rel (%p338) target = $region52
      $region51: #{tpu_custom_call.1} parent=5 // pred_region
        %s342 = ssub.s32 %s23, 1
        %s343 = sand.u32 %s88, 1
        %s344 = scalar_lea.sflag [#allocation3], %s343
        %s345 = sand.u32 %s88, 1
        %s346 = smul.addr %s345, 16
        %s347 = scalar_lea.vmem [#allocation2], %s346
        // Predicated region
        $region53: #{tpu_custom_call.1} parent=51 // pred_check
          %p348 = pneg %p101
        $region54: #{tpu_custom_call.1} parent=51 // pred_check_branch
          %350 = sbr.rel (%p348) target = $region56
        $region55: #{tpu_custom_call.1} parent=51 // pred_region
          %351 = dma.done %s344, 256
        $region56: #{tpu_custom_call.1} parent=51 // pred_fallthru
          _
        %s352 = sand.u32 %s28, 1
        %s353 = scalar_lea.sflag [#allocation6], %s352
        %s354 = sand.u32 %s114, 1
        %s355 = smul.addr %s354, 16
        %s356 = scalar_lea.vmem [#allocation5], %s355
        // Predicated region
        $region57: #{tpu_custom_call.1} parent=51 // pred_check
          %p357 = pneg %p127
        $region58: #{tpu_custom_call.1} parent=51 // pred_check_branch
          %359 = sbr.rel (%p357) target = $region60
        $region59: #{tpu_custom_call.1} parent=51 // pred_region
          %360 = dma.done %s353, 256
        $region60: #{tpu_custom_call.1} parent=51 // pred_fallthru
          _
        // Predicated region
        $region61: #{tpu_custom_call.1} parent=51 // pred_check
          %p361 = pneg %p190
        $region62: #{tpu_custom_call.1} parent=51 // pred_check_branch
          %363 = sbr.rel (%p361) target = $region64
        $region63: #{tpu_custom_call.1} parent=51 // pred_region
          %364 = dma.done [#allocation6], 2048
        $region64: #{tpu_custom_call.1} parent=51 // pred_fallthru
          _
        %p365 = scmp.lt.s32.totalorder %s28, 1
        %s366 = scalar_select %p365, %s28, 1
        %s367 = smul.addr %s366, 2
        %s368 = smul.addr %s367, 8
        %s369 = scalar_lea.vmem %s0, %s368
        %p370 = pneg %p49
        %p371 = pneg %p46
        %p372 = scmp.lt.s32.totalorder %s28, 1
        %s373 = scalar_select %p372, %s28, 1
        %s374 = smul.addr %s373, 2
        %s375 = smul.addr %s374, 8
        %s376 = scalar_lea.vmem %s1, %s375
        %p377 = pneg %p75
        %p378 = pneg %p72
        %s379 = sand.u32 %s88, 1
        %s380 = scalar_lea.sflag [#allocation3], %s379
        %s381 = sand.u32 %s88, 1
        %s382 = smul.addr %s381, 16
        %s383 = scalar_lea.vmem [#allocation2], %s382
        %p384 = pneg %p101
        %p385 = pneg %p98
        %s386 = sand.u32 %s28, 1
        %s387 = scalar_lea.sflag [#allocation6], %s386
        %s388 = sand.u32 %s114, 1
        %s389 = smul.addr %s388, 16
        %s390 = scalar_lea.vmem [#allocation5], %s389
        %p391 = pneg %p127
        %p392 = pneg %p124
        %p393 = pneg %p148
        %p394 = pneg %p145
        %p395 = pneg %p169
        %p396 = pneg %p166
        %p397 = pneg %p190
        %p398 = pneg %p187
        %p399 = pneg %p211
        %p400 = pneg %p208
        %p401 = pneg %p237
        %p402 = pneg %p234
        %s403 = sand.u32 %s224, 1
        %s404 = scalar_lea.sflag [#allocation4], %s403
        %s405 = sand.u32 %s224, 1
        %s406 = smul.addr %s405, 16
        %s407 = scalar_lea.vmem [#allocation8], %s406
        %p408 = scmp.lt.s32.totalorder %s28, 1
        %s409 = scalar_select %p408, %s28, 1
        %s410 = smul.addr %s409, 2
        %s411 = smul.addr %s410, 8
        %s412 = scalar_lea.vmem %s0, %s411
        %p413 = scmp.lt.s32.totalorder %s28, 1
        %s414 = scalar_select %p413, %s28, 1
        %s415 = smul.addr %s414, 2
        %s416 = smul.addr %s415, 8
        %s417 = scalar_lea.vmem %s1, %s416
        %v418 = vld [vmem:[%s417] sm:$0xff]
        %v419 = vld [vmem:[%s417 + $0x8] sm:$0xff]
        %vm420 = vcmp.gt.f32.partialorder %v418, 0.0
        %vm421 = vcmp.gt.f32.partialorder %v419, 0.0
        %v422 = vld [vmem:[%s412] sm:$0xff]
        %v423 = vld [vmem:[%s412 + $0x8] sm:$0xff]
        %v424 = vld [vmem:[%s4] sm:$0xff]
        %v425 = vld [vmem:[%s5] sm:$0x1]
        %v426 = vld [vmem:[%s347] sm:$0xff]
        %v427 = vld [vmem:[%s347 + $0x8] sm:$0xff]
        %vm428 = vcmask 64512
        %v430 = vsel %vm428, %v422, 0
        %v433 = vsel %vm428, %v423, 0
        %435 = vmatprep.subr.mxu0 0.0
        %436 = vmatpush1.msra.mxu0 %v424
        %437 = vmatprep.subr.mxu0 0.0
        %438 = vmatpush1.msra.mxu0 0.0
        %439 = vmatprep.subr.mxu0 0.0
        %440 = vmatpush1.msra.mxu0 0.0
        %441 = vmatprep.subr.mxu0 0.0
        %442 = vmatpush1.msra.mxu0 0.0
        %443 = vmatprep.subr.mxu0 0.0
        %444 = vmatpush1.msra.mxu0 0.0
        %445 = vmatprep.subr.mxu0 0.0
        %446 = vmatpush1.msra.mxu0 0.0
        %447 = vmatprep.subr.mxu0 0.0
        %448 = vmatpush1.msra.mxu0 0.0
        %449 = vmatprep.subr.mxu0 0.0
        %450 = vmatpush1.msra.mxu0 0.0
        %451 = vmatprep.subr.mxu0 0.0
        %452 = vmatpush1.msra.mxu0 0.0
        %453 = vmatprep.subr.mxu0 0.0
        %454 = vmatpush1.msra.mxu0 0.0
        %455 = vmatprep.subr.mxu0 0.0
        %456 = vmatpush1.msra.mxu0 0.0
        %457 = vmatprep.subr.mxu0 0.0
        %458 = vmatpush1.msra.mxu0 0.0
        %459 = vmatprep.subr.mxu0 0.0
        %460 = vmatpush1.msra.mxu0 0.0
        %461 = vmatprep.subr.mxu0 0.0
        %462 = vmatpush1.msra.mxu0 0.0
        %463 = vmatprep.subr.mxu0 0.0
        %464 = vmatpush1.msra.mxu0 0.0
        %465 = vmatprep.subr.mxu0 0.0
        %466 = vmatpush1.msra.mxu0 0.0
        %467 = vmatprep.subr.mxu0 0.0
        %468 = vmatpush1.msra.mxu0 0.0
        %469 = vmatprep.subr.mxu0 0.0
        %470 = vmatpush1.msra.mxu0 0.0
        %471 = vmatprep.subr.mxu0 0.0
        %472 = vmatpush1.msra.mxu0 0.0
        %473 = vmatprep.subr.mxu0 0.0
        %474 = vmatpush1.msra.mxu0 0.0
        %475 = vmatprep.subr.mxu0 0.0
        %476 = vmatpush1.msra.mxu0 0.0
        %477 = vmatprep.subr.mxu0 0.0
        %478 = vmatpush1.msra.mxu0 0.0
        %479 = vmatprep.subr.mxu0 0.0
        %480 = vmatpush1.msra.mxu0 0.0
        %481 = vmatprep.subr.mxu0 0.0
        %482 = vmatpush1.msra.mxu0 0.0
        %483 = vmatprep.subr.mxu0 0.0
        %484 = vmatpush1.msra.mxu0 0.0
        %485 = vmatprep.subr.mxu0 0.0
        %486 = vmatpush1.msra.mxu0 0.0
        %487 = vmatprep.subr.mxu0 0.0
        %488 = vmatpush1.msra.mxu0 0.0
        %489 = vmatprep.subr.mxu0 0.0
        %490 = vmatpush1.msra.mxu0 0.0
        %491 = vmatprep.subr.mxu0 0.0
        %492 = vmatpush1.msra.mxu0 0.0
        %493 = vmatprep.subr.mxu0 0.0
        %494 = vmatpush1.msra.mxu0 0.0
        %495 = vmatprep.subr.mxu0 0.0
        %496 = vmatpush1.msra.mxu0 0.0
        %497 = vmatprep.subr.mxu0 0.0
        %498 = vmatpush1.msra.mxu0 0.0
        %499 = vmatprep.mubr.f32.mxu0 0.0
        %500 = vmatmul.mubr.f32.gmra.mrb[0].mxu0 %v430
        %v501 = vpop.f32.mrb[0].mxu0
        %v502 = vadd.f32 0.0, %v501
        %v503 = vpop.f32.mrb[0].mxu0
        %504 = vmatprep.mubr.f32.mxu0 0.0
        %505 = vmatmul.mubr.f32.gmra.mrb[0].mxu0 %v433
        %v506 = vpop.f32.mrb[0].mxu0
        %v507 = vadd.f32 0.0, %v506
        %v508 = vpop.f32.mrb[0].mxu0
        %509 = vdwg.mxu0
        %512 = vrot.lane.b32.xlu0 %v502, 2
        %v513 = vpop.permute.xlu0 %512
        %514 = vrot.lane.b32.xlu0 %v507, 2
        %v515 = vpop.permute.xlu0 %514
        %518 = vxpose.xlu0.b32.start [1/16] %v513, 128
        %519 = vxpose.xlu0.b32.cont [2/16] %v515, 128
        %520 = vxpose.xlu0.b32.cont [3/16] 0.0, 128
        %521 = vxpose.xlu0.b32.cont [4/16] 0.0, 128
        %522 = vxpose.xlu0.b32.cont [5/16] 0.0, 128
        %523 = vxpose.xlu0.b32.cont [6/16] 0.0, 128
        %524 = vxpose.xlu0.b32.cont [7/16] 0.0, 128
        %525 = vxpose.xlu0.b32.cont [8/16] 0.0, 128
        %526 = vxpose.xlu0.b32.cont [9/16] 0.0, 128
        %527 = vxpose.xlu0.b32.cont [10/16] 0.0, 128
        %528 = vxpose.xlu0.b32.cont [11/16] 0.0, 128
        %529 = vxpose.xlu0.b32.cont [12/16] 0.0, 128
        %530 = vxpose.xlu0.b32.cont [13/16] 0.0, 128
        %531 = vxpose.xlu0.b32.cont [14/16] 0.0, 128
        %532 = vxpose.xlu0.b32.cont [15/16] 0.0, 128
        %533 = vxpose.xlu0.b32.end [16/16] 0.0, 128
        %v534 = vpop.trf.xlu0
        %v535 = vpop.trf.xlu0
        %v536 = vpop.trf.xlu0
        %v537 = vpop.trf.xlu0
        %v538 = vpop.trf.xlu0
        %v539 = vpop.trf.xlu0
        %v540 = vpop.trf.xlu0
        %v541 = vpop.trf.xlu0
        %v542 = vpop.trf.xlu0
        %v543 = vpop.trf.xlu0
        %v544 = vpop.trf.xlu0
        %v545 = vpop.trf.xlu0
        %v546 = vpop.trf.xlu0
        %v547 = vpop.trf.xlu0
        %v548 = vpop.trf.xlu0
        %v549 = vpop.trf.xlu0
        %550 = vset.pattern.permute.xlu0 127
        %551 = vperm.xlu0 %550, %v502
        %v552 = vpop.permute.xlu0 %551
        %554 = vset.pattern.permute.xlu0 127
        %555 = vperm.xlu0 %554, %v507
        %v556 = vpop.permute.xlu0 %555
        %v558 = vlaneseq
        %v559 = vshrl.u32 %v558, 7
        %v560 = vsub.s32 0, %v559
        %v561 = vrot.slane %v534, %v560
        %v562 = vadd.f32 %v552, %v561
        %v563 = vadd.f32 %v556, %v561
        %v564 = vadd.f32 %v562, %v426
        %v565 = vadd.f32 %v563, %v427
        %vm566 = vcmp.gt.f32.partialorder %v564, 0.0
        %vm567 = vcmp.gt.f32.partialorder %v565, 0.0
        %v568 = vmul.f32 %v564, 0.2
        %v569 = vmul.f32 %v565, 0.2
        %v570 = vsel %vm566, %v564, %v568
        %v571 = vsel %vm567, %v565, %v569
        %v572 = vsel %vm420, %v570, -1e+30
        %v573 = vsel %vm421, %v571, -1e+30
        %vm574 = vcmask 130048
        %v575 = vsel %vm574, %v572, -inf
        %576 = vmax.xlane.f32.xlu0 %v575
        %v577 = vpop.xlane.xlu0 %576
        %v578 = vsel %vm574, %v573, -inf
        %579 = vmax.xlane.f32.xlu0 %v578
        %v580 = vpop.xlane.xlu0 %579
        %v581 = vsub.f32 %v572, %v577
        %v582 = vsub.f32 %v573, %v580
        %v583 = vmul.f32 %v581, 1.442695
        %v584 = vpow.pop %v583
        %v585 = vmul.f32 %v582, 1.442695
        %v586 = vpow.pop %v585
        %v587 = vsel %vm574, %v584, 0.0
        %588 = vadd.xlane.f32.xlu0 %v587
        %v589 = vpop.xlane.xlu0 %588
        %v590 = vsel %vm574, %v586, 0.0
        %591 = vadd.xlane.f32.xlu0 %v590
        %v592 = vpop.xlane.xlu0 %591
        %v593 = vrcp.pop %v589
        %v594 = vrcp.pop %v592
        %v595 = vmul.f32 %v589, %v593
        %v596 = vmul.f32 %v592, %v594
        %v597 = vsub.f32 2.0, %v595
        %v598 = vsub.f32 2.0, %v596
        %v599 = vmul.f32 %v593, %v597
        %v600 = vmul.f32 %v594, %v598
        %v601 = vmul.f32 %v584, %v599
        %v602 = vmul.f32 %v586, %v600
        %v604 = vlaneseq
        %v605 = vshrl.u32 %v604, 7
        %v606 = vsub.s32 0, %v605
        %v607 = vrot.slane %v425, %v606
        %v610 = vsel %vm574, %v601, 0
        %v613 = vsel %vm574, %v602, 0
        %615 = vmatprep.subr.mxu0 0.0
        %616 = vmatpush1.msra.mxu0 %v502
        %617 = vmatprep.subr.mxu0 0.0
        %618 = vmatpush1.msra.mxu0 %v507
        %619 = vmatprep.subr.mxu0 0.0
        %620 = vmatpush1.msra.mxu0 0.0
        %621 = vmatprep.subr.mxu0 0.0
        %622 = vmatpush1.msra.mxu0 0.0
        %623 = vmatprep.subr.mxu0 0.0
        %624 = vmatpush1.msra.mxu0 0.0
        %625 = vmatprep.subr.mxu0 0.0
        %626 = vmatpush1.msra.mxu0 0.0
        %627 = vmatprep.subr.mxu0 0.0
        %628 = vmatpush1.msra.mxu0 0.0
        %629 = vmatprep.subr.mxu0 0.0
        %630 = vmatpush1.msra.mxu0 0.0
        %631 = vmatprep.subr.mxu0 0.0
        %632 = vmatpush1.msra.mxu0 0.0
        %633 = vmatprep.subr.mxu0 0.0
        %634 = vmatpush1.msra.mxu0 0.0
        %635 = vmatprep.subr.mxu0 0.0
        %636 = vmatpush1.msra.mxu0 0.0
        %637 = vmatprep.subr.mxu0 0.0
        %638 = vmatpush1.msra.mxu0 0.0
        %639 = vmatprep.subr.mxu0 0.0
        %640 = vmatpush1.msra.mxu0 0.0
        %641 = vmatprep.subr.mxu0 0.0
        %642 = vmatpush1.msra.mxu0 0.0
        %643 = vmatprep.subr.mxu0 0.0
        %644 = vmatpush1.msra.mxu0 0.0
        %645 = vmatprep.subr.mxu0 0.0
        %646 = vmatpush1.msra.mxu0 0.0
        %647 = vmatprep.subr.mxu0 0.0
        %648 = vmatpush1.msra.mxu0 0.0
        %649 = vmatprep.subr.mxu0 0.0
        %650 = vmatpush1.msra.mxu0 0.0
        %651 = vmatprep.subr.mxu0 0.0
        %652 = vmatpush1.msra.mxu0 0.0
        %653 = vmatprep.subr.mxu0 0.0
        %654 = vmatpush1.msra.mxu0 0.0
        %655 = vmatprep.subr.mxu0 0.0
        %656 = vmatpush1.msra.mxu0 0.0
        %657 = vmatprep.subr.mxu0 0.0
        %658 = vmatpush1.msra.mxu0 0.0
        %659 = vmatprep.subr.mxu0 0.0
        %660 = vmatpush1.msra.mxu0 0.0
        %661 = vmatprep.subr.mxu0 0.0
        %662 = vmatpush1.msra.mxu0 0.0
        %663 = vmatprep.subr.mxu0 0.0
        %664 = vmatpush1.msra.mxu0 0.0
        %665 = vmatprep.subr.mxu0 0.0
        %666 = vmatpush1.msra.mxu0 0.0
        %667 = vmatprep.subr.mxu0 0.0
        %668 = vmatpush1.msra.mxu0 0.0
        %669 = vmatprep.subr.mxu0 0.0
        %670 = vmatpush1.msra.mxu0 0.0
        %671 = vmatprep.subr.mxu0 0.0
        %672 = vmatpush1.msra.mxu0 0.0
        %673 = vmatprep.subr.mxu0 0.0
        %674 = vmatpush1.msra.mxu0 0.0
        %675 = vmatprep.subr.mxu0 0.0
        %676 = vmatpush1.msra.mxu0 0.0
        %677 = vmatprep.subr.mxu0 0.0
        %678 = vmatpush1.msra.mxu0 0.0
        %679 = vmatprep.mubr.f32.mxu0 0.0
        %680 = vmatmul.mubr.f32.gmra.mrb[0].mxu0 %v610
        %v681 = vpop.f32.mrb[0].mxu0
        %v682 = vadd.f32 %v607, %v681
        %v683 = vpop.f32.mrb[0].mxu0
        %684 = vmatprep.mubr.f32.mxu0 0.0
        %685 = vmatmul.mubr.f32.gmra.mrb[0].mxu0 %v613
        %v686 = vpop.f32.mrb[0].mxu0
        %v687 = vadd.f32 %v607, %v686
        %v688 = vpop.f32.mrb[0].mxu0
        %689 = vdwg.mxu0
        %v690 = vmax.f32 %v682, 0.0
        %v691 = vmax.f32 %v687, 0.0
        %v692 = vld [vmem:[#allocation7] sm:$0xff]
        %v693 = vld [vmem:[#allocation7 + $0x8] sm:$0xff]
        %v694 = vld [vmem:[#allocation7 + $0x10] sm:$0xff]
        %v695 = vld [vmem:[#allocation7 + $0x18] sm:$0xff]
        %v696 = vld [vmem:[#allocation7 + $0x20] sm:$0xff]
        %v697 = vld [vmem:[#allocation7 + $0x28] sm:$0xff]
        %v698 = vld [vmem:[#allocation7 + $0x30] sm:$0xff]
        %v699 = vld [vmem:[#allocation7 + $0x38] sm:$0xff]
        %v700 = vld [vmem:[#allocation7 + $0x40] sm:$0xff]
        %v701 = vld [vmem:[#allocation7 + $0x48] sm:$0xff]
        %v702 = vld [vmem:[#allocation7 + $0x50] sm:$0xff]
        %v703 = vld [vmem:[#allocation7 + $0x58] sm:$0xff]
        %v704 = vld [vmem:[#allocation7 + $0x60] sm:$0xff]
        %v705 = vld [vmem:[#allocation7 + $0x68] sm:$0xff]
        %v706 = vld [vmem:[#allocation7 + $0x70] sm:$0xff]
        %v707 = vld [vmem:[#allocation7 + $0x78] sm:$0xff]
        %v708 = vld [vmem:[%s7] sm:$0x1]
        %v709 = vld [vmem:[%s356] sm:$0xff]
        %v710 = vld [vmem:[%s356 + $0x8] sm:$0xff]
        %711 = vmatprep.subr.mxu0 0.0
        %712 = vmatpush1.msra.mxu0 %v692
        %713 = vmatprep.subr.mxu0 0.0
        %714 = vmatpush1.msra.mxu0 %v693
        %715 = vmatprep.subr.mxu0 0.0
        %716 = vmatpush1.msra.mxu0 %v694
        %717 = vmatprep.subr.mxu0 0.0
        %718 = vmatpush1.msra.mxu0 %v695
        %719 = vmatprep.subr.mxu0 0.0
        %720 = vmatpush1.msra.mxu0 %v696
        %721 = vmatprep.subr.mxu0 0.0
        %722 = vmatpush1.msra.mxu0 %v697
        %723 = vmatprep.subr.mxu0 0.0
        %724 = vmatpush1.msra.mxu0 %v698
        %725 = vmatprep.subr.mxu0 0.0
        %726 = vmatpush1.msra.mxu0 %v699
        %727 = vmatprep.subr.mxu0 0.0
        %728 = vmatpush1.msra.mxu0 %v700
        %729 = vmatprep.subr.mxu0 0.0
        %730 = vmatpush1.msra.mxu0 %v701
        %731 = vmatprep.subr.mxu0 0.0
        %732 = vmatpush1.msra.mxu0 %v702
        %733 = vmatprep.subr.mxu0 0.0
        %734 = vmatpush1.msra.mxu0 %v703
        %735 = vmatprep.subr.mxu0 0.0
        %736 = vmatpush1.msra.mxu0 %v704
        %737 = vmatprep.subr.mxu0 0.0
        %738 = vmatpush1.msra.mxu0 %v705
        %739 = vmatprep.subr.mxu0 0.0
        %740 = vmatpush1.msra.mxu0 %v706
        %741 = vmatprep.subr.mxu0 0.0
        %742 = vmatpush1.msra.mxu0 %v707
        %743 = vmatprep.subr.mxu0 0.0
        %744 = vmatpush1.msra.mxu0 0.0
        %745 = vmatprep.subr.mxu0 0.0
        %746 = vmatpush1.msra.mxu0 0.0
        %747 = vmatprep.subr.mxu0 0.0
        %748 = vmatpush1.msra.mxu0 0.0
        %749 = vmatprep.subr.mxu0 0.0
        %750 = vmatpush1.msra.mxu0 0.0
        %751 = vmatprep.subr.mxu0 0.0
        %752 = vmatpush1.msra.mxu0 0.0
        %753 = vmatprep.subr.mxu0 0.0
        %754 = vmatpush1.msra.mxu0 0.0
        %755 = vmatprep.subr.mxu0 0.0
        %756 = vmatpush1.msra.mxu0 0.0
        %757 = vmatprep.subr.mxu0 0.0
        %758 = vmatpush1.msra.mxu0 0.0
        %759 = vmatprep.subr.mxu0 0.0
        %760 = vmatpush1.msra.mxu0 0.0
        %761 = vmatprep.subr.mxu0 0.0
        %762 = vmatpush1.msra.mxu0 0.0
        %763 = vmatprep.subr.mxu0 0.0
        %764 = vmatpush1.msra.mxu0 0.0
        %765 = vmatprep.subr.mxu0 0.0
        %766 = vmatpush1.msra.mxu0 0.0
        %767 = vmatprep.subr.mxu0 0.0
        %768 = vmatpush1.msra.mxu0 0.0
        %769 = vmatprep.subr.mxu0 0.0
        %770 = vmatpush1.msra.mxu0 0.0
        %771 = vmatprep.subr.mxu0 0.0
        %772 = vmatpush1.msra.mxu0 0.0
        %773 = vmatprep.subr.mxu0 0.0
        %774 = vmatpush1.msra.mxu0 0.0
        %775 = vmatprep.mubr.f32.mxu0 0.0
        %776 = vmatmul.mubr.f32.gmra.mrb[0].mxu0 %v690
        %v777 = vpop.f32.mrb[0].mxu0
        %v778 = vadd.f32 0.0, %v777
        %v779 = vpop.f32.mrb[0].mxu0
        %780 = vmatprep.mubr.f32.mxu0 0.0
        %781 = vmatmul.mubr.f32.gmra.mrb[0].mxu0 %v691
        %v782 = vpop.f32.mrb[0].mxu0
        %v783 = vadd.f32 0.0, %v782
        %v784 = vpop.f32.mrb[0].mxu0
        %785 = vdwg.mxu0
        %788 = vrot.lane.b32.xlu0 %v778, 2
        %v789 = vpop.permute.xlu0 %788
        %790 = vrot.lane.b32.xlu0 %v783, 2
        %v791 = vpop.permute.xlu0 %790
        %794 = vxpose.xlu0.b32.start [1/16] %v789, 128
        %795 = vxpose.xlu0.b32.cont [2/16] %v791, 128
        %796 = vxpose.xlu0.b32.cont [3/16] 0.0, 128
        %797 = vxpose.xlu0.b32.cont [4/16] 0.0, 128
        %798 = vxpose.xlu0.b32.cont [5/16] 0.0, 128
        %799 = vxpose.xlu0.b32.cont [6/16] 0.0, 128
        %800 = vxpose.xlu0.b32.cont [7/16] 0.0, 128
        %801 = vxpose.xlu0.b32.cont [8/16] 0.0, 128
        %802 = vxpose.xlu0.b32.cont [9/16] 0.0, 128
        %803 = vxpose.xlu0.b32.cont [10/16] 0.0, 128
        %804 = vxpose.xlu0.b32.cont [11/16] 0.0, 128
        %805 = vxpose.xlu0.b32.cont [12/16] 0.0, 128
        %806 = vxpose.xlu0.b32.cont [13/16] 0.0, 128
        %807 = vxpose.xlu0.b32.cont [14/16] 0.0, 128
        %808 = vxpose.xlu0.b32.cont [15/16] 0.0, 128
        %809 = vxpose.xlu0.b32.end [16/16] 0.0, 128
        %v810 = vpop.trf.xlu0
        %v811 = vpop.trf.xlu0
        %v812 = vpop.trf.xlu0
        %v813 = vpop.trf.xlu0
        %v814 = vpop.trf.xlu0
        %v815 = vpop.trf.xlu0
        %v816 = vpop.trf.xlu0
        %v817 = vpop.trf.xlu0
        %v818 = vpop.trf.xlu0
        %v819 = vpop.trf.xlu0
        %v820 = vpop.trf.xlu0
        %v821 = vpop.trf.xlu0
        %v822 = vpop.trf.xlu0
        %v823 = vpop.trf.xlu0
        %v824 = vpop.trf.xlu0
        %v825 = vpop.trf.xlu0
        %826 = vset.pattern.permute.xlu0 127
        %827 = vperm.xlu0 %826, %v778
        %v828 = vpop.permute.xlu0 %827
        %830 = vset.pattern.permute.xlu0 127
        %831 = vperm.xlu0 %830, %v783
        %v832 = vpop.permute.xlu0 %831
        %v834 = vlaneseq
        %v835 = vshrl.u32 %v834, 7
        %v836 = vsub.s32 0, %v835
        %v837 = vrot.slane %v810, %v836
        %v838 = vadd.f32 %v828, %v837
        %v839 = vadd.f32 %v832, %v837
        %v840 = vadd.f32 %v838, %v709
        %v841 = vadd.f32 %v839, %v710
        %vm842 = vcmp.gt.f32.partialorder %v840, 0.0
        %vm843 = vcmp.gt.f32.partialorder %v841, 0.0
        %v844 = vmul.f32 %v840, 0.2
        %v845 = vmul.f32 %v841, 0.2
        %v846 = vsel %vm842, %v840, %v844
        %v847 = vsel %vm843, %v841, %v845
        %v848 = vsel %vm420, %v846, -1e+30
        %v849 = vsel %vm421, %v847, -1e+30
        %v850 = vsel %vm574, %v848, -inf
        %851 = vmax.xlane.f32.xlu0 %v850
        %v852 = vpop.xlane.xlu0 %851
        %v853 = vsel %vm574, %v849, -inf
        %854 = vmax.xlane.f32.xlu0 %v853
        %v855 = vpop.xlane.xlu0 %854
        %v856 = vsub.f32 %v848, %v852
        %v857 = vsub.f32 %v849, %v855
        %v858 = vmul.f32 %v856, 1.442695
        %v859 = vpow.pop %v858
        %v860 = vmul.f32 %v857, 1.442695
        %v861 = vpow.pop %v860
        %v862 = vsel %vm574, %v859, 0.0
        %863 = vadd.xlane.f32.xlu0 %v862
        %v864 = vpop.xlane.xlu0 %863
        %v865 = vsel %vm574, %v861, 0.0
        %866 = vadd.xlane.f32.xlu0 %v865
        %v867 = vpop.xlane.xlu0 %866
        %v868 = vrcp.pop %v864
        %v869 = vrcp.pop %v867
        %v870 = vmul.f32 %v864, %v868
        %v871 = vmul.f32 %v867, %v869
        %v872 = vsub.f32 2.0, %v870
        %v873 = vsub.f32 2.0, %v871
        %v874 = vmul.f32 %v868, %v872
        %v875 = vmul.f32 %v869, %v873
        %v876 = vmul.f32 %v859, %v874
        %v877 = vmul.f32 %v861, %v875
        %v879 = vlaneseq
        %v880 = vshrl.u32 %v879, 7
        %v881 = vsub.s32 0, %v880
        %v882 = vrot.slane %v708, %v881
        %v885 = vsel %vm574, %v876, 0
        %v888 = vsel %vm574, %v877, 0
        %890 = vmatprep.subr.mxu0 0.0
        %891 = vmatpush1.msra.mxu0 %v778
        %892 = vmatprep.subr.mxu0 0.0
        %893 = vmatpush1.msra.mxu0 %v783
        %894 = vmatprep.subr.mxu0 0.0
        %895 = vmatpush1.msra.mxu0 0.0
        %896 = vmatprep.subr.mxu0 0.0
        %897 = vmatpush1.msra.mxu0 0.0
        %898 = vmatprep.subr.mxu0 0.0
        %899 = vmatpush1.msra.mxu0 0.0
        %900 = vmatprep.subr.mxu0 0.0
        %901 = vmatpush1.msra.mxu0 0.0
        %902 = vmatprep.subr.mxu0 0.0
        %903 = vmatpush1.msra.mxu0 0.0
        %904 = vmatprep.subr.mxu0 0.0
        %905 = vmatpush1.msra.mxu0 0.0
        %906 = vmatprep.subr.mxu0 0.0
        %907 = vmatpush1.msra.mxu0 0.0
        %908 = vmatprep.subr.mxu0 0.0
        %909 = vmatpush1.msra.mxu0 0.0
        %910 = vmatprep.subr.mxu0 0.0
        %911 = vmatpush1.msra.mxu0 0.0
        %912 = vmatprep.subr.mxu0 0.0
        %913 = vmatpush1.msra.mxu0 0.0
        %914 = vmatprep.subr.mxu0 0.0
        %915 = vmatpush1.msra.mxu0 0.0
        %916 = vmatprep.subr.mxu0 0.0
        %917 = vmatpush1.msra.mxu0 0.0
        %918 = vmatprep.subr.mxu0 0.0
        %919 = vmatpush1.msra.mxu0 0.0
        %920 = vmatprep.subr.mxu0 0.0
        %921 = vmatpush1.msra.mxu0 0.0
        %922 = vmatprep.subr.mxu0 0.0
        %923 = vmatpush1.msra.mxu0 0.0
        %924 = vmatprep.subr.mxu0 0.0
        %925 = vmatpush1.msra.mxu0 0.0
        %926 = vmatprep.subr.mxu0 0.0
        %927 = vmatpush1.msra.mxu0 0.0
        %928 = vmatprep.subr.mxu0 0.0
        %929 = vmatpush1.msra.mxu0 0.0
        %930 = vmatprep.subr.mxu0 0.0
        %931 = vmatpush1.msra.mxu0 0.0
        %932 = vmatprep.subr.mxu0 0.0
        %933 = vmatpush1.msra.mxu0 0.0
        %934 = vmatprep.subr.mxu0 0.0
        %935 = vmatpush1.msra.mxu0 0.0
        %936 = vmatprep.subr.mxu0 0.0
        %937 = vmatpush1.msra.mxu0 0.0
        %938 = vmatprep.subr.mxu0 0.0
        %939 = vmatpush1.msra.mxu0 0.0
        %940 = vmatprep.subr.mxu0 0.0
        %941 = vmatpush1.msra.mxu0 0.0
        %942 = vmatprep.subr.mxu0 0.0
        %943 = vmatpush1.msra.mxu0 0.0
        %944 = vmatprep.subr.mxu0 0.0
        %945 = vmatpush1.msra.mxu0 0.0
        %946 = vmatprep.subr.mxu0 0.0
        %947 = vmatpush1.msra.mxu0 0.0
        %948 = vmatprep.subr.mxu0 0.0
        %949 = vmatpush1.msra.mxu0 0.0
        %950 = vmatprep.subr.mxu0 0.0
        %951 = vmatpush1.msra.mxu0 0.0
        %952 = vmatprep.subr.mxu0 0.0
        %953 = vmatpush1.msra.mxu0 0.0
        %954 = vmatprep.mubr.f32.mxu0 0.0
        %955 = vmatmul.mubr.f32.gmra.mrb[0].mxu0 %v885
        %v956 = vpop.f32.mrb[0].mxu0
        %v957 = vadd.f32 %v882, %v956
        %v958 = vpop.f32.mrb[0].mxu0
        %959 = vmatprep.mubr.f32.mxu0 0.0
        %960 = vmatmul.mubr.f32.gmra.mrb[0].mxu0 %v888
        %v961 = vpop.f32.mrb[0].mxu0
        %v962 = vadd.f32 %v882, %v961
        %v963 = vpop.f32.mrb[0].mxu0
        %964 = vdwg.mxu0
        %v965 = vlaneseq
        %v966 = vand.u32 %v965, 127
        %vm967 = vcmp.lt.s32.totalorder %v966, 4
        %v968 = vsel %vm967, %v957, -1e+30
        %v969 = vsel %vm967, %v962, -1e+30
        %970 = vmax.xlane.f32.xlu0 %v968
        %v971 = vpop.xlane.xlu0 %970
        %972 = vmax.xlane.f32.xlu0 %v969
        %v973 = vpop.xlane.xlu0 %972
        %v974 = vsub.f32 %v968, %v971
        %v975 = vsub.f32 %v969, %v973
        %v976 = vmul.f32 %v974, 1.442695
        %v977 = vpow.pop %v976
        %v978 = vmul.f32 %v975, 1.442695
        %v979 = vpow.pop %v978
        %980 = vadd.xlane.f32.xlu0 %v977
        %v981 = vpop.xlane.xlu0 %980
        %982 = vadd.xlane.f32.xlu0 %v979
        %v983 = vpop.xlane.xlu0 %982
        %v984 = vlog2.pop %v981
        %v985 = vmul.f32 %v984, 0.6931472
        %v986 = vlog2.pop %v983
        %v987 = vmul.f32 %v986, 0.6931472
        %v988 = vsub.f32 %v974, %v985
        %v989 = vsub.f32 %v975, %v987
        %990 = vst [vmem:[%s407] sm:$0xff] %v988
        %991 = vst [vmem:[%s407 + $0x8] sm:$0xff] %v989
        %s992 = sand.u32 %s224, 1
        %s993 = scalar_lea.sflag [#allocation4], %s992
        %s994 = sand.u32 %s224, 1
        %s995 = smul.addr %s994, 16
        %s996 = scalar_lea.vmem [#allocation8], %s995
        // Predicated region
        $region65: #{tpu_custom_call.1} parent=51 // pred_check
          %p997 = pneg %p234
        $region66: #{tpu_custom_call.1} parent=51 // pred_check_branch
          %999 = sbr.rel (%p997) target = $region68
        $region67: #{tpu_custom_call.1} parent=51 // pred_region
          %s1001 = ssub.s32 256, 256
          %1002 = vsyncadd %s993, %s1001
          %s1003 = smul.addr %s28, 2
          %s1004 = smul.addr %s1003, 128
          %s1005 = scalar_lea.hbm %s8, %s1004
          %s1006 = sshll.u32 %s996, 4
          %s1007 = int_to_ptr.vmem [resolvable:$true] %s1006
          %1012 = dma.vmem_to_hbm [thread:$0]  %s1007, 256, %s1005, %s993, 128, 128, 8
        $region68: #{tpu_custom_call.1} parent=51 // pred_fallthru
          _
      $region52: #{tpu_custom_call.1} parent=5 // pred_fallthru
        _
      %p1013 = scmp.le.s32.totalorder 2, %s23
      // Predicated region
      $region69: #{tpu_custom_call.1} parent=5 // pred_check
        %p1014 = pneg %p1013
      $region70: #{tpu_custom_call.1} parent=5 // pred_check_branch
        %1016 = sbr.rel (%p1014) target = $region72
      $region71: #{tpu_custom_call.1} parent=5 // pred_region
        %s1017 = ssub.s32 %s23, 2
        // Predicated region
        $region73: #{tpu_custom_call.1} parent=71 // pred_check
          %p1018 = pneg %p240
        $region74: #{tpu_custom_call.1} parent=71 // pred_check_branch
          %1020 = sbr.rel (%p1018) target = $region76
        $region75: #{tpu_custom_call.1} parent=71 // pred_region
          %s1021 = sand.u32 %s225, 1
          %s1022 = scalar_lea.sflag [#allocation4], %s1021
          %s1023 = sand.u32 %s225, 1
          %s1024 = smul.addr %s1023, 16
          %s1025 = scalar_lea.vmem [#allocation8], %s1024
          %1026 = dma.done %s1022, 256
        $region76: #{tpu_custom_call.1} parent=71 // pred_fallthru
          _
      $region72: #{tpu_custom_call.1} parent=5 // pred_fallthru
        _
    $region6: #{tpu_custom_call.1} parent=1 // loop_footer
      %s27 = sadd.s32 1, %s23
    $region7: #{tpu_custom_call.1} parent=1 // loop_footer_branch
      %22 = sbr.rel target = $region3
    $region8: #{tpu_custom_call.1} parent=1 // loop_exit
      _
    %1027 = vsyncpa [#allocation3], 1
    %s1028 = scalar_lea.sflag [#allocation3], 1
    %1029 = vsyncpa %s1028, 1
    %1030 = vsyncpa [#allocation6], 1
    %s1031 = scalar_lea.sflag [#allocation6], 1
    %1032 = vsyncpa %s1031, 1
    %1033 = vsyncpa [#allocation4], 1
    %s1034 = scalar_lea.sflag [#allocation4], 1
    %1035 = vsyncpa %s1034, 1

</llo_original>
